<compile_context>
chip_gen: v7x
topology: tpu7x:2x2x1
jax: 0.10.0
libtpu: 0.0.40
codegen_flags: <defaults>
</compile_context>

<pallas_src>
import functools

import jax
import jax.numpy as jnp
from jax.experimental import pallas as pl
from jax.experimental.pallas import tpu as pltpu


def _critic_kernel(xt_ref, w1_ref, w2_ref, cvec_ref, o_ref, *, fc1, fc2):
    """One batch tile, feature-major: (d_in, TB) -> (1, TB).

    xt_ref:   (d_in, TB)          f32  state features, batch on lanes
    w1_ref:   (fc1, d_in)         f32  PyTorch nn.Linear layout (out, in)
    w2_ref:   (fc2, fc1)          f32
    cvec_ref: (fc1+2*fc2+1, 1)    f32  packed [b1 | b2 | w3 | b3] column
    o_ref:    (1, TB)             f32
    """
    # Static sub-slices of the packed constants (free; offsets are 8-aligned
    # for the default fc1 = fc2 = 32).
    b1 = cvec_ref[0:fc1, :]                              # (fc1, 1)
    b2 = cvec_ref[fc1:fc1 + fc2, :]                      # (fc2, 1)
    w3 = cvec_ref[fc1 + fc2:fc1 + 2 * fc2, :]            # (fc2, 1)
    b3 = cvec_ref[fc1 + 2 * fc2:fc1 + 2 * fc2 + 1, :]    # (1, 1)

    # fc1 + ReLU: MXU matmul with N = TB (lane-dense), bias broadcast along
    # lanes on the VPU.
    h1 = jnp.dot(w1_ref[...], xt_ref[...], preferred_element_type=jnp.float32)
    h1 = jnp.maximum(h1 + b1, 0.0)
    # fc2 + ReLU
    h2 = jnp.dot(w2_ref[...], h1, preferred_element_type=jnp.float32)
    h2 = jnp.maximum(h2 + b2, 0.0)
    # fc3 (single output feature): VPU multiply + sublane reduction instead of
    # an M=1 MXU matmul; the (1, TB) result is a lane-dense store.
    o_ref[...] = jnp.sum(h2 * w3, axis=0, keepdims=True) + b3


def init_critic_params(key, input_dims, fc1_dims, fc2_dims):
    """PyTorch nn.Linear layout + default init U(-1/sqrt(fan_in), +1/sqrt(fan_in))."""
    ks = jax.random.split(key, 6)

    def linear(kw, kb, fan_in, fan_out):
        bound = 1.0 / jnp.sqrt(jnp.float32(fan_in))
        w = jax.random.uniform(kw, (fan_out, fan_in), jnp.float32, -bound, bound)
        b = jax.random.uniform(kb, (fan_out,), jnp.float32, -bound, bound)
        return w, b

    w1, b1 = linear(ks[0], ks[1], input_dims, fc1_dims)
    w2, b2 = linear(ks[2], ks[3], fc1_dims, fc2_dims)
    w3, b3 = linear(ks[4], ks[5], fc2_dims, 1)
    return {"w1": w1, "b1": b1, "w2": w2, "b2": b2, "w3": w3, "b3": b3}


def pack_critic_params(params):
    """One-time packing (outside the per-step call): f32 weights in PyTorch
    (out, in) layout plus all tiny per-feature vectors concatenated into a
    single column so the kernel needs a single constant DMA for them."""
    fc1 = params["w1"].shape[0]
    fc2 = params["w2"].shape[0]
    cvec = jnp.concatenate(
        [params["b1"].reshape(fc1, 1),
         params["b2"].reshape(fc2, 1),
         params["w3"].reshape(fc2, 1),
         params["b3"].reshape(1, 1)],
        axis=0).astype(jnp.float32)
    return {"w1": params["w1"].astype(jnp.float32),
            "w2": params["w2"].astype(jnp.float32),
            "cvec": cvec}


def critic_forward(x, packed, *, block_b=2048):
    """x: [B, d_in] f32 -> [B, 1] f32 (same semantics as Critic.forward)."""
    w1, w2, cvec = packed["w1"], packed["w2"], packed["cvec"]
    B, d_in = x.shape
    fc1 = w1.shape[0]
    fc2 = w2.shape[0]
    n_const = cvec.shape[0]

    # Batch lives on the lane axis.  A single grid step (tb = B) is best on the
    # single-TensorCore v5e/v6e (each extra grid step is ~0.35us of pure
    # overhead with nothing to hide it); for large B, tile at a multiple of 128
    # so every x / output tile stays lane-dense.  VMEM is never a concern at
    # these dims (a tb=2048 f32 x-tile is 64 KiB).
    if B <= block_b:
        tb = B
    else:
        assert block_b % 128 == 0, "batch tile must be a multiple of 128 lanes"
        tb = block_b
    grid = (pl.cdiv(B, tb),)

    # Only wrapper-side op on x: the (B, d_in) -> (d_in, B) transpose that puts
    # the batch on lanes (tiny; no dtype-cast HBM round trip).
    xt = x.astype(jnp.float32).T

    const = lambda i: (0, 0)  # weights/constants: same block every step (VMEM-resident)
    in_specs = [
        pl.BlockSpec((d_in, tb), lambda i: (0, i)),   # x^T tiled along batch lanes
        pl.BlockSpec((fc1, d_in), const),
        pl.BlockSpec((fc2, fc1), const),
        pl.BlockSpec((n_const, 1), const),            # packed [b1|b2|w3|b3] column
    ]
    out_specs = pl.BlockSpec((1, tb), lambda i: (0, i))

    flops = 2 * B * (d_in * fc1 + fc1 * fc2 + fc2)
    bytes_accessed = 4 * (xt.size + w1.size + w2.size + cvec.size + B)

    out = pl.pallas_call(
        functools.partial(_critic_kernel, fc1=fc1, fc2=fc2),
        out_shape=jax.ShapeDtypeStruct((1, B), jnp.float32),
        grid=grid,
        in_specs=in_specs,
        out_specs=out_specs,
        compiler_params=pltpu.CompilerParams(
            # "parallel" is safe on every generation; on v7x a CORE_PARALLEL
            # batch axis (grid a multiple of 2) would also engage the 2nd TC.
            dimension_semantics=("parallel",)),
        cost_estimate=pl.CostEstimate(
            flops=flops, transcendentals=0, bytes_accessed=bytes_accessed),
    )(xt, w1, w2, cvec)

    # (1, B) -> (B, 1): pure reshape of contiguous memory (one dim is 1).
    return out.reshape(B, 1)


if __name__ == "__main__":
    # Shapes implied by the module: Critic(input_dims=(8,), fc1_dims=32, fc2_dims=32)
    D_IN, FC1, FC2 = 8, 32, 32
    B = 512

    key = jax.random.PRNGKey(0)
    k_x, k_p = jax.random.split(key)
    x = jax.random.normal(k_x, (B, D_IN), jnp.float32)
    params = init_critic_params(k_p, D_IN, FC1, FC2)
    packed = pack_critic_params(params)

    # Pure-f32 reference (same math as the PyTorch forward).  HIGHEST precision
    # so the only tolerance needed is for MXU f32 rounding in the kernel.
    hp = jax.lax.Precision.HIGHEST

    def ref(xv):
        h1 = jnp.maximum(
            jnp.dot(xv, params["w1"].T, precision=hp) + params["b1"], 0.0)
        h2 = jnp.maximum(
            jnp.dot(h1, params["w2"].T, precision=hp) + params["b2"], 0.0)
        return jnp.dot(h2, params["w3"].T, precision=hp) + params["b3"]

    # Default path: single grid step (tb = B) — best for single-TC chips.
    out = jax.block_until_ready(critic_forward(x, packed))
    assert out.shape == (B, 1)
    assert jnp.allclose(out, ref(x), atol=1e-2, rtol=1e-2), float(
        jnp.max(jnp.abs(out - ref(x))))

    # Multi-tile path: exercises the batch grid (lane-dense 128-multiple tiles).
    out_tiled = jax.block_until_ready(critic_forward(x, packed, block_b=256))
    assert out_tiled.shape == (B, 1)
    assert jnp.allclose(out_tiled, ref(x), atol=1e-2, rtol=1e-2)

    # Tiny batch (single block narrower than a lane group).
    out_small = jax.block_until_ready(critic_forward(x[:4], packed))
    assert out_small.shape == (4, 1)
    assert jnp.allclose(out_small, ref(x[:4]), atol=1e-2, rtol=1e-2)

    # TODO(synk): nn.MSELoss / optim.Adam / .to(device) are training-loop &
    # device plumbing, not part of the forward pass, and are not translated.
    print("KERNEL_OK")
</pallas_src>

<mosaic_0001>
module attributes {stable_mosaic.version = 11 : i64} {
  func.func @_critic_kernel(%arg0: i32, %arg1: memref<8x512xf32, #tpu.memory_space<vmem>>, %arg2: memref<32x8xf32, #tpu.memory_space<vmem>>, %arg3: memref<32x32xf32, #tpu.memory_space<vmem>>, %arg4: memref<97x1xf32, #tpu.memory_space<vmem>>, %arg5: memref<1x512xf32, #tpu.memory_space<vmem>>) attributes {dimension_semantics = [#tpu.dimension_semantics<parallel>], iteration_bounds = array<i64: 1>, scalar_prefetch = 0 : i64, scratch_operands = 0 : i64, tpu.core_type = #tpu.core_type<tc>, window_params = [{transform_indices = @transform_0, window_bounds = array<i64: 8, 512>}, {pipeline_mode = #tpu.pipeline_mode<synchronous>, transform_indices = @transform_1, window_bounds = array<i64: 32, 8>}, {pipeline_mode = #tpu.pipeline_mode<synchronous>, transform_indices = @transform_2, window_bounds = array<i64: 32, 32>}, {pipeline_mode = #tpu.pipeline_mode<synchronous>, transform_indices = @transform_3, window_bounds = array<i64: 97, 1>}, {transform_indices = @transform_4, window_bounds = array<i64: 1, 512>}]} {
    %c0 = arith.constant 0 : index
    %c0_0 = arith.constant 0 : index
    %0 = vector.load %arg4[%c0, %c0_0] : memref<97x1xf32, #tpu.memory_space<vmem>>, vector<32x1xf32>
    %c32 = arith.constant 32 : index
    %c0_1 = arith.constant 0 : index
    %1 = vector.load %arg4[%c32, %c0_1] : memref<97x1xf32, #tpu.memory_space<vmem>>, vector<32x1xf32>
    %c64 = arith.constant 64 : index
    %c0_2 = arith.constant 0 : index
    %2 = vector.load %arg4[%c64, %c0_2] : memref<97x1xf32, #tpu.memory_space<vmem>>, vector<32x1xf32>
    %c96 = arith.constant 96 : index
    %c0_3 = arith.constant 0 : index
    %3 = vector.load %arg4[%c96, %c0_3] : memref<97x1xf32, #tpu.memory_space<vmem>>, vector<1x1xf32>
    %c0_4 = arith.constant 0 : index
    %c0_5 = arith.constant 0 : index
    %4 = vector.load %arg2[%c0_4, %c0_5] : memref<32x8xf32, #tpu.memory_space<vmem>>, vector<32x8xf32>
    %c0_6 = arith.constant 0 : index
    %c0_7 = arith.constant 0 : index
    %5 = vector.load %arg1[%c0_6, %c0_7] : memref<8x512xf32, #tpu.memory_space<vmem>>, vector<8x512xf32>
    %cst = arith.constant dense<0.000000e+00> : vector<32x512xf32>
    %6 = tpu.matmul %4, %5, %cst {dimension_numbers = #tpu.dot_dimension_numbers<[1], [0], [0], [1], [0, 0, 1, 1], [], []>} : vector<32x8xf32>, vector<8x512xf32>, vector<32x512xf32> -> vector<32x512xf32>
    %7 = vector.broadcast %0 : vector<32x1xf32> to vector<32x512xf32>
    %8 = arith.addf %6, %7 : vector<32x512xf32>
    %cst_8 = arith.constant 0.000000e+00 : f32
    %9 = vector.broadcast %cst_8 : f32 to vector<32x512xf32>
    %10 = arith.maximumf %8, %9 : vector<32x512xf32>
    %c0_9 = arith.constant 0 : index
    %c0_10 = arith.constant 0 : index
    %11 = vector.load %arg3[%c0_9, %c0_10] : memref<32x32xf32, #tpu.memory_space<vmem>>, vector<32x32xf32>
    %cst_11 = arith.constant dense<0.000000e+00> : vector<32x512xf32>
    %12 = tpu.matmul %11, %10, %cst_11 {dimension_numbers = #tpu.dot_dimension_numbers<[1], [0], [0], [1], [0, 0, 1, 1], [], []>} : vector<32x32xf32>, vector<32x512xf32>, vector<32x512xf32> -> vector<32x512xf32>
    %13 = vector.broadcast %1 : vector<32x1xf32> to vector<32x512xf32>
    %14 = arith.addf %12, %13 : vector<32x512xf32>
    %cst_12 = arith.constant 0.000000e+00 : f32
    %15 = vector.broadcast %cst_12 : f32 to vector<32x512xf32>
    %16 = arith.maximumf %14, %15 : vector<32x512xf32>
    %17 = vector.broadcast %2 : vector<32x1xf32> to vector<32x512xf32>
    %18 = arith.mulf %16, %17 : vector<32x512xf32>
    %cst_13 = arith.constant dense<0.000000e+00> : vector<512xf32>
    %19 = vector.multi_reduction <add>, %18, %cst_13 [0] : vector<32x512xf32> to vector<512xf32>
    %20 = vector.shape_cast %19 : vector<512xf32> to vector<1x512xf32>
    %21 = vector.broadcast %3 : vector<1x1xf32> to vector<1x512xf32>
    %22 = arith.addf %20, %21 : vector<1x512xf32>
    %c0_14 = arith.constant 0 : index
    %c0_15 = arith.constant 0 : index
    %23 = vector.load %arg5[%c0_14, %c0_15] : memref<1x512xf32, #tpu.memory_space<vmem>>, vector<1x512xf32>
    tpu.vector_store %arg5[%c0_14, %c0_15], %22 {strides = array<i32>} : memref<1x512xf32, #tpu.memory_space<vmem>>, vector<1x512xf32>,
    return
  }
  func.func @transform_0(%arg0: i32) -> (i32, i32) {
    %c0_i32 = arith.constant 0 : i32
    %c0_i32_0 = arith.constant 0 : i32
    return %c0_i32, %arg0 : i32, i32
  }
  func.func @transform_1(%arg0: i32) -> (i32, i32) {
    %c0_i32 = arith.constant 0 : i32
    %c0_i32_0 = arith.constant 0 : i32
    %c0_i32_1 = arith.constant 0 : i32
    return %c0_i32, %c0_i32_0 : i32, i32
  }
  func.func @transform_2(%arg0: i32) -> (i32, i32) {
    %c0_i32 = arith.constant 0 : i32
    %c0_i32_0 = arith.constant 0 : i32
    %c0_i32_1 = arith.constant 0 : i32
    return %c0_i32, %c0_i32_0 : i32, i32
  }
  func.func @transform_3(%arg0: i32) -> (i32, i32) {
    %c0_i32 = arith.constant 0 : i32
    %c0_i32_0 = arith.constant 0 : i32
    %c0_i32_1 = arith.constant 0 : i32
    return %c0_i32, %c0_i32_0 : i32, i32
  }
  func.func @transform_4(%arg0: i32) -> (i32, i32) {
    %c0_i32 = arith.constant 0 : i32
    %c0_i32_0 = arith.constant 0 : i32
    return %c0_i32, %arg0 : i32, i32
  }
}

</mosaic_0001>

<llo_original>
// kernel: tpu_custom_call.1
$region0: #{tpu_custom_call.1}
  #allocation0 [shape = 'u32[]', space=smem, size = 0x4, offset = 0x4, fixed_abs, tag = 'smem constant byte address 0x4 - core index']
  #allocation1 [shape = 'u32[144,128]{1,0:T(1,128)}', space=vmem, size = 0x12000, scoped, tag = 'internal scratch']
  %s0 = inlined_call_operand.vmem [shape: f32[8,512], index: 0, kind: input, shape index: {}]
  %s1 = inlined_call_operand.vmem [shape: f32[32,8], index: 1, kind: input, shape index: {}]
  %s2 = inlined_call_operand.vmem [shape: f32[32,32], index: 2, kind: input, shape index: {}]
  %s3 = inlined_call_operand.vmem [shape: f32[97,1], index: 3, kind: input, shape index: {}]
  %s4 = inlined_call_operand.hbm [shape: f32[1,512], index: 4, kind: output, shape index: {}]
  %s5 = sld [smem:[#allocation0]]
  $region26: #{tpu_custom_call.1} parent=0
    _
  %s7 = ssub.s32 1, %s5
  %s8 = scalar_select 0, %s7, %s5
  $region1: #{tpu_custom_call.1} parent=0
    #allocation2 [shape = 'u8[2048]{0}', space=vmem, size = 0x800, scoped, tag = 'output window, operand 0, single buffered']
    #allocation3 [shape = 's32[1]{0}', space=sflag, size = 0x4, scoped, tag = 'scoped memory for tpu_custom_call.1']
    %9 = vsyncpa [#allocation3], 0
    // Predicated region
    $region2: #{tpu_custom_call.1} parent=1 // pred_check
      _
    $region3: #{tpu_custom_call.1} parent=1 // pred_check_branch
      %11 = sbr.rel (0) target = $region5
    $region4: #{tpu_custom_call.1} parent=1 // pred_region
      _
    $region5: #{tpu_custom_call.1} parent=1 // pred_fallthru
      _
    // Predicated region
    $region6: #{tpu_custom_call.1} parent=1 // pred_check
      _
    $region7: #{tpu_custom_call.1} parent=1 // pred_check_branch
      %13 = sbr.rel (0) target = $region9
    $region8: #{tpu_custom_call.1} parent=1 // pred_region
      _
    $region9: #{tpu_custom_call.1} parent=1 // pred_fallthru
      _
    // Predicated region
    $region10: #{tpu_custom_call.1} parent=1 // pred_check
      _
    $region11: #{tpu_custom_call.1} parent=1 // pred_check_branch
      %15 = sbr.rel (0) target = $region13
    $region12: #{tpu_custom_call.1} parent=1 // pred_region
      _
    $region13: #{tpu_custom_call.1} parent=1 // pred_fallthru
      _
    // Predicated region
    $region14: #{tpu_custom_call.1} parent=1 // pred_check
      _
    $region15: #{tpu_custom_call.1} parent=1 // pred_check_branch
      %17 = sbr.rel (0) target = $region17
    $region16: #{tpu_custom_call.1} parent=1 // pred_region
      _
    $region17: #{tpu_custom_call.1} parent=1 // pred_fallthru
      _
    %v18 = vld [vmem:[%s3] sm:$0xff]
    %v19 = vld [vmem:[%s3 + $0x8] sm:$0xff]
    %v20 = vld [vmem:[%s3 + $0x10] sm:$0xff]
    %v21 = vld [vmem:[%s3 + $0x18] sm:$0xff]
    %v22 = vld [vmem:[%s3 + $0x20] sm:$0xff]
    %v23 = vld [vmem:[%s3 + $0x28] sm:$0xff]
    %v24 = vld [vmem:[%s3 + $0x30] sm:$0xff]
    %v25 = vld [vmem:[%s3 + $0x38] sm:$0xff]
    %v26 = vld [vmem:[%s3 + $0x40] sm:$0xff]
    %v27 = vld [vmem:[%s3 + $0x48] sm:$0xff]
    %v28 = vld [vmem:[%s3 + $0x50] sm:$0xff]
    %v29 = vld [vmem:[%s3 + $0x58] sm:$0xff]
    %v30 = vld [vmem:[%s3 + $0x60] sm:$0x1]
    %v31 = vld [vmem:[%s1] sm:$0xff]
    %v32 = vld [vmem:[%s1 + $0x8] sm:$0xff]
    %v33 = vld [vmem:[%s1 + $0x10] sm:$0xff]
    %v34 = vld [vmem:[%s1 + $0x18] sm:$0xff]
    %v35 = vld [vmem:[%s0] sm:$0xff]
    %v36 = vld [vmem:[%s0 + $0x8] sm:$0xff]
    %v37 = vld [vmem:[%s0 + $0x10] sm:$0xff]
    %v38 = vld [vmem:[%s0 + $0x18] sm:$0xff]
    %40 = vset.pattern.permute.xlu0 0
    %41 = vperm.xlu0 %40, %v18
    %v42 = vpop.permute.xlu0 %41
    %45 = vset.pattern.permute.xlu0 0
    %46 = vperm.xlu0 %45, %v19
    %v47 = vpop.permute.xlu0 %46
    %50 = vset.pattern.permute.xlu0 0
    %51 = vperm.xlu0 %50, %v20
    %v52 = vpop.permute.xlu0 %51
    %55 = vset.pattern.permute.xlu0 0
    %56 = vperm.xlu0 %55, %v21
    %v57 = vpop.permute.xlu0 %56
    %vm59 = vcmask 64512
    %v61 = vsel %vm59, %v31, 0
    %v64 = vsel %vm59, %v32, 0
    %v67 = vsel %vm59, %v33, 0
    %v70 = vsel %vm59, %v34, 0
    %72 = vmatprep.subr.mxu0 %v36
    %73 = vmatpush1.msra.mxu0 %v35
    %74 = vmatprep.subr.mxu0 0.0
    %75 = vmatpush1.msra.mxu0 0.0
    %76 = vmatprep.subr.mxu0 0.0
    %77 = vmatpush1.msra.mxu0 0.0
    %78 = vmatprep.subr.mxu0 0.0
    %79 = vmatpush1.msra.mxu0 0.0
    %80 = vmatprep.subr.mxu0 0.0
    %81 = vmatpush1.msra.mxu0 0.0
    %82 = vmatprep.subr.mxu0 0.0
    %83 = vmatpush1.msra.mxu0 0.0
    %84 = vmatprep.subr.mxu0 0.0
    %85 = vmatpush1.msra.mxu0 0.0
    %86 = vmatprep.subr.mxu0 0.0
    %87 = vmatpush1.msra.mxu0 0.0
    %88 = vmatprep.subr.mxu0 0.0
    %89 = vmatpush1.msra.mxu0 0.0
    %90 = vmatprep.subr.mxu0 0.0
    %91 = vmatpush1.msra.mxu0 0.0
    %92 = vmatprep.subr.mxu0 0.0
    %93 = vmatpush1.msra.mxu0 0.0
    %94 = vmatprep.subr.mxu0 0.0
    %95 = vmatpush1.msra.mxu0 0.0
    %96 = vmatprep.subr.mxu0 0.0
    %97 = vmatpush1.msra.mxu0 0.0
    %98 = vmatprep.subr.mxu0 0.0
    %99 = vmatpush1.msra.mxu0 0.0
    %100 = vmatprep.subr.mxu0 0.0
    %101 = vmatpush1.msra.mxu0 0.0
    %102 = vmatprep.subr.mxu0 0.0
    %103 = vmatpush1.msra.mxu0 0.0
    %104 = vmatprep.subr.mxu0 0.0
    %105 = vmatpush1.msra.mxu0 0.0
    %106 = vmatprep.subr.mxu0 0.0
    %107 = vmatpush1.msra.mxu0 0.0
    %108 = vmatprep.subr.mxu0 0.0
    %109 = vmatpush1.msra.mxu0 0.0
    %110 = vmatprep.subr.mxu0 0.0
    %111 = vmatpush1.msra.mxu0 0.0
    %112 = vmatprep.subr.mxu0 0.0
    %113 = vmatpush1.msra.mxu0 0.0
    %114 = vmatprep.subr.mxu0 0.0
    %115 = vmatpush1.msra.mxu0 0.0
    %116 = vmatprep.subr.mxu0 0.0
    %117 = vmatpush1.msra.mxu0 0.0
    %118 = vmatprep.subr.mxu0 0.0
    %119 = vmatpush1.msra.mxu0 0.0
    %120 = vmatprep.subr.mxu0 0.0
    %121 = vmatpush1.msra.mxu0 0.0
    %122 = vmatprep.subr.mxu0 0.0
    %123 = vmatpush1.msra.mxu0 0.0
    %124 = vmatprep.subr.mxu0 0.0
    %125 = vmatpush1.msra.mxu0 0.0
    %126 = vmatprep.subr.mxu0 0.0
    %127 = vmatpush1.msra.mxu0 0.0
    %128 = vmatprep.subr.mxu0 0.0
    %129 = vmatpush1.msra.mxu0 0.0
    %130 = vmatprep.subr.mxu0 0.0
    %131 = vmatpush1.msra.mxu0 0.0
    %132 = vmatprep.subr.mxu0 0.0
    %133 = vmatpush1.msra.mxu0 0.0
    %134 = vmatprep.subr.mxu0 0.0
    %135 = vmatpush1.msra.mxu0 0.0
    %136 = vmatprep.mubr.f32.mxu0 0.0
    %137 = vmatmul.mubr.f32.gmra.mrb[0].mxu0 %v61
    %v138 = vpop.f32.mrb[0].mxu0
    %v139 = vadd.f32 %v42, %v138
    %v140 = vpop.f32.mrb[0].mxu0
    %v141 = vadd.f32 %v42, %v140
    %142 = vmatprep.mubr.f32.mxu0 0.0
    %143 = vmatmul.mubr.f32.gmra.mrb[0].mxu0 %v64
    %v144 = vpop.f32.mrb[0].mxu0
    %v145 = vadd.f32 %v47, %v144
    %v146 = vpop.f32.mrb[0].mxu0
    %v147 = vadd.f32 %v47, %v146
    %148 = vmatprep.mubr.f32.mxu0 0.0
    %149 = vmatmul.mubr.f32.gmra.mrb[0].mxu0 %v67
    %v150 = vpop.f32.mrb[0].mxu0
    %v151 = vadd.f32 %v52, %v150
    %v152 = vpop.f32.mrb[0].mxu0
    %v153 = vadd.f32 %v52, %v152
    %154 = vmatprep.mubr.f32.mxu0 0.0
    %155 = vmatmul.mubr.f32.gmra.mrb[0].mxu0 %v70
    %v156 = vpop.f32.mrb[0].mxu0
    %v157 = vadd.f32 %v57, %v156
    %v158 = vpop.f32.mrb[0].mxu0
    %v159 = vadd.f32 %v57, %v158
    %160 = vdwg.mxu0
    %161 = vmatprep.subr.mxu0 %v38
    %162 = vmatpush1.msra.mxu0 %v37
    %163 = vmatprep.subr.mxu0 0.0
    %164 = vmatpush1.msra.mxu0 0.0
    %165 = vmatprep.subr.mxu0 0.0
    %166 = vmatpush1.msra.mxu0 0.0
    %167 = vmatprep.subr.mxu0 0.0
    %168 = vmatpush1.msra.mxu0 0.0
    %169 = vmatprep.subr.mxu0 0.0
    %170 = vmatpush1.msra.mxu0 0.0
    %171 = vmatprep.subr.mxu0 0.0
    %172 = vmatpush1.msra.mxu0 0.0
    %173 = vmatprep.subr.mxu0 0.0
    %174 = vmatpush1.msra.mxu0 0.0
    %175 = vmatprep.subr.mxu0 0.0
    %176 = vmatpush1.msra.mxu0 0.0
    %177 = vmatprep.subr.mxu0 0.0
    %178 = vmatpush1.msra.mxu0 0.0
    %179 = vmatprep.subr.mxu0 0.0
    %180 = vmatpush1.msra.mxu0 0.0
    %181 = vmatprep.subr.mxu0 0.0
    %182 = vmatpush1.msra.mxu0 0.0
    %183 = vmatprep.subr.mxu0 0.0
    %184 = vmatpush1.msra.mxu0 0.0
    %185 = vmatprep.subr.mxu0 0.0
    %186 = vmatpush1.msra.mxu0 0.0
    %187 = vmatprep.subr.mxu0 0.0
    %188 = vmatpush1.msra.mxu0 0.0
    %189 = vmatprep.subr.mxu0 0.0
    %190 = vmatpush1.msra.mxu0 0.0
    %191 = vmatprep.subr.mxu0 0.0
    %192 = vmatpush1.msra.mxu0 0.0
    %193 = vmatprep.subr.mxu0 0.0
    %194 = vmatpush1.msra.mxu0 0.0
    %195 = vmatprep.subr.mxu0 0.0
    %196 = vmatpush1.msra.mxu0 0.0
    %197 = vmatprep.subr.mxu0 0.0
    %198 = vmatpush1.msra.mxu0 0.0
    %199 = vmatprep.subr.mxu0 0.0
    %200 = vmatpush1.msra.mxu0 0.0
    %201 = vmatprep.subr.mxu0 0.0
    %202 = vmatpush1.msra.mxu0 0.0
    %203 = vmatprep.subr.mxu0 0.0
    %204 = vmatpush1.msra.mxu0 0.0
    %205 = vmatprep.subr.mxu0 0.0
    %206 = vmatpush1.msra.mxu0 0.0
    %207 = vmatprep.subr.mxu0 0.0
    %208 = vmatpush1.msra.mxu0 0.0
    %209 = vmatprep.subr.mxu0 0.0
    %210 = vmatpush1.msra.mxu0 0.0
    %211 = vmatprep.subr.mxu0 0.0
    %212 = vmatpush1.msra.mxu0 0.0
    %213 = vmatprep.subr.mxu0 0.0
    %214 = vmatpush1.msra.mxu0 0.0
    %215 = vmatprep.subr.mxu0 0.0
    %216 = vmatpush1.msra.mxu0 0.0
    %217 = vmatprep.subr.mxu0 0.0
    %218 = vmatpush1.msra.mxu0 0.0
    %219 = vmatprep.subr.mxu0 0.0
    %220 = vmatpush1.msra.mxu0 0.0
    %221 = vmatprep.subr.mxu0 0.0
    %222 = vmatpush1.msra.mxu0 0.0
    %223 = vmatprep.subr.mxu0 0.0
    %224 = vmatpush1.msra.mxu0 0.0
    %225 = vmatprep.mubr.f32.mxu0 0.0
    %226 = vmatmul.mubr.f32.gmra.mrb[0].mxu0 %v61
    %v227 = vpop.f32.mrb[0].mxu0
    %v228 = vadd.f32 %v42, %v227
    %v229 = vpop.f32.mrb[0].mxu0
    %v230 = vadd.f32 %v42, %v229
    %231 = vmatprep.mubr.f32.mxu0 0.0
    %232 = vmatmul.mubr.f32.gmra.mrb[0].mxu0 %v64
    %v233 = vpop.f32.mrb[0].mxu0
    %v234 = vadd.f32 %v47, %v233
    %v235 = vpop.f32.mrb[0].mxu0
    %v236 = vadd.f32 %v47, %v235
    %237 = vmatprep.mubr.f32.mxu0 0.0
    %238 = vmatmul.mubr.f32.gmra.mrb[0].mxu0 %v67
    %v239 = vpop.f32.mrb[0].mxu0
    %v240 = vadd.f32 %v52, %v239
    %v241 = vpop.f32.mrb[0].mxu0
    %v242 = vadd.f32 %v52, %v241
    %243 = vmatprep.mubr.f32.mxu0 0.0
    %244 = vmatmul.mubr.f32.gmra.mrb[0].mxu0 %v70
    %v245 = vpop.f32.mrb[0].mxu0
    %v246 = vadd.f32 %v57, %v245
    %v247 = vpop.f32.mrb[0].mxu0
    %v248 = vadd.f32 %v57, %v247
    %249 = vdwg.mxu0
    %v250 = vmax.f32 %v139, 0.0
    %v251 = vmax.f32 %v141, 0.0
    %v252 = vmax.f32 %v228, 0.0
    %v253 = vmax.f32 %v230, 0.0
    %v254 = vmax.f32 %v145, 0.0
    %v255 = vmax.f32 %v147, 0.0
    %v256 = vmax.f32 %v234, 0.0
    %v257 = vmax.f32 %v236, 0.0
    %v258 = vmax.f32 %v151, 0.0
    %v259 = vmax.f32 %v153, 0.0
    %v260 = vmax.f32 %v240, 0.0
    %v261 = vmax.f32 %v242, 0.0
    %v262 = vmax.f32 %v157, 0.0
    %v263 = vmax.f32 %v159, 0.0
    %v264 = vmax.f32 %v246, 0.0
    %v265 = vmax.f32 %v248, 0.0
    %v266 = vld [vmem:[%s2] sm:$0xff]
    %v267 = vld [vmem:[%s2 + $0x8] sm:$0xff]
    %v268 = vld [vmem:[%s2 + $0x10] sm:$0xff]
    %v269 = vld [vmem:[%s2 + $0x18] sm:$0xff]
    %271 = vset.pattern.permute.xlu0 0
    %272 = vperm.xlu0 %271, %v22
    %v273 = vpop.permute.xlu0 %272
    %276 = vset.pattern.permute.xlu0 0
    %277 = vperm.xlu0 %276, %v23
    %v278 = vpop.permute.xlu0 %277
    %281 = vset.pattern.permute.xlu0 0
    %282 = vperm.xlu0 %281, %v24
    %v283 = vpop.permute.xlu0 %282
    %286 = vset.pattern.permute.xlu0 0
    %287 = vperm.xlu0 %286, %v25
    %v288 = vpop.permute.xlu0 %287
    %vm290 = vcmask 261120
    %v292 = vsel %vm290, %v266, 0
    %v295 = vsel %vm290, %v267, 0
    %v298 = vsel %vm290, %v268, 0
    %v301 = vsel %vm290, %v269, 0
    %303 = vmatprep.subr.mxu0 %v251
    %304 = vmatpush1.msra.mxu0 %v250
    %305 = vmatprep.subr.mxu0 %v255
    %306 = vmatpush1.msra.mxu0 %v254
    %307 = vmatprep.subr.mxu0 %v259
    %308 = vmatpush1.msra.mxu0 %v258
    %309 = vmatprep.subr.mxu0 %v263
    %310 = vmatpush1.msra.mxu0 %v262
    %311 = vmatprep.subr.mxu0 0.0
    %312 = vmatpush1.msra.mxu0 0.0
    %313 = vmatprep.subr.mxu0 0.0
    %314 = vmatpush1.msra.mxu0 0.0
    %315 = vmatprep.subr.mxu0 0.0
    %316 = vmatpush1.msra.mxu0 0.0
    %317 = vmatprep.subr.mxu0 0.0
    %318 = vmatpush1.msra.mxu0 0.0
    %319 = vmatprep.subr.mxu0 0.0
    %320 = vmatpush1.msra.mxu0 0.0
    %321 = vmatprep.subr.mxu0 0.0
    %322 = vmatpush1.msra.mxu0 0.0
    %323 = vmatprep.subr.mxu0 0.0
    %324 = vmatpush1.msra.mxu0 0.0
    %325 = vmatprep.subr.mxu0 0.0
    %326 = vmatpush1.msra.mxu0 0.0
    %327 = vmatprep.subr.mxu0 0.0
    %328 = vmatpush1.msra.mxu0 0.0
    %329 = vmatprep.subr.mxu0 0.0
    %330 = vmatpush1.msra.mxu0 0.0
    %331 = vmatprep.subr.mxu0 0.0
    %332 = vmatpush1.msra.mxu0 0.0
    %333 = vmatprep.subr.mxu0 0.0
    %334 = vmatpush1.msra.mxu0 0.0
    %335 = vmatprep.subr.mxu0 0.0
    %336 = vmatpush1.msra.mxu0 0.0
    %337 = vmatprep.subr.mxu0 0.0
    %338 = vmatpush1.msra.mxu0 0.0
    %339 = vmatprep.subr.mxu0 0.0
    %340 = vmatpush1.msra.mxu0 0.0
    %341 = vmatprep.subr.mxu0 0.0
    %342 = vmatpush1.msra.mxu0 0.0
    %343 = vmatprep.subr.mxu0 0.0
    %344 = vmatpush1.msra.mxu0 0.0
    %345 = vmatprep.subr.mxu0 0.0
    %346 = vmatpush1.msra.mxu0 0.0
    %347 = vmatprep.subr.mxu0 0.0
    %348 = vmatpush1.msra.mxu0 0.0
    %349 = vmatprep.subr.mxu0 0.0
    %350 = vmatpush1.msra.mxu0 0.0
    %351 = vmatprep.subr.mxu0 0.0
    %352 = vmatpush1.msra.mxu0 0.0
    %353 = vmatprep.subr.mxu0 0.0
    %354 = vmatpush1.msra.mxu0 0.0
    %355 = vmatprep.subr.mxu0 0.0
    %356 = vmatpush1.msra.mxu0 0.0
    %357 = vmatprep.subr.mxu0 0.0
    %358 = vmatpush1.msra.mxu0 0.0
    %359 = vmatprep.subr.mxu0 0.0
    %360 = vmatpush1.msra.mxu0 0.0
    %361 = vmatprep.subr.mxu0 0.0
    %362 = vmatpush1.msra.mxu0 0.0
    %363 = vmatprep.subr.mxu0 0.0
    %364 = vmatpush1.msra.mxu0 0.0
    %365 = vmatprep.subr.mxu0 0.0
    %366 = vmatpush1.msra.mxu0 0.0
    %367 = vmatprep.mubr.f32.mxu0 0.0
    %368 = vmatmul.mubr.f32.gmra.mrb[0].mxu0 %v292
    %v369 = vpop.f32.mrb[0].mxu0
    %v370 = vadd.f32 %v273, %v369
    %v371 = vpop.f32.mrb[0].mxu0
    %v372 = vadd.f32 %v273, %v371
    %373 = vmatprep.mubr.f32.mxu0 0.0
    %374 = vmatmul.mubr.f32.gmra.mrb[0].mxu0 %v295
    %v375 = vpop.f32.mrb[0].mxu0
    %v376 = vadd.f32 %v278, %v375
    %v377 = vpop.f32.mrb[0].mxu0
    %v378 = vadd.f32 %v278, %v377
    %379 = vmatprep.mubr.f32.mxu0 0.0
    %380 = vmatmul.mubr.f32.gmra.mrb[0].mxu0 %v298
    %v381 = vpop.f32.mrb[0].mxu0
    %v382 = vadd.f32 %v283, %v381
    %v383 = vpop.f32.mrb[0].mxu0
    %v384 = vadd.f32 %v283, %v383
    %385 = vmatprep.mubr.f32.mxu0 0.0
    %386 = vmatmul.mubr.f32.gmra.mrb[0].mxu0 %v301
    %v387 = vpop.f32.mrb[0].mxu0
    %v388 = vadd.f32 %v288, %v387
    %v389 = vpop.f32.mrb[0].mxu0
    %v390 = vadd.f32 %v288, %v389
    %391 = vdwg.mxu0
    %392 = vmatprep.subr.mxu0 %v253
    %393 = vmatpush1.msra.mxu0 %v252
    %394 = vmatprep.subr.mxu0 %v257
    %395 = vmatpush1.msra.mxu0 %v256
    %396 = vmatprep.subr.mxu0 %v261
    %397 = vmatpush1.msra.mxu0 %v260
    %398 = vmatprep.subr.mxu0 %v265
    %399 = vmatpush1.msra.mxu0 %v264
    %400 = vmatprep.subr.mxu0 0.0
    %401 = vmatpush1.msra.mxu0 0.0
    %402 = vmatprep.subr.mxu0 0.0
    %403 = vmatpush1.msra.mxu0 0.0
    %404 = vmatprep.subr.mxu0 0.0
    %405 = vmatpush1.msra.mxu0 0.0
    %406 = vmatprep.subr.mxu0 0.0
    %407 = vmatpush1.msra.mxu0 0.0
    %408 = vmatprep.subr.mxu0 0.0
    %409 = vmatpush1.msra.mxu0 0.0
    %410 = vmatprep.subr.mxu0 0.0
    %411 = vmatpush1.msra.mxu0 0.0
    %412 = vmatprep.subr.mxu0 0.0
    %413 = vmatpush1.msra.mxu0 0.0
    %414 = vmatprep.subr.mxu0 0.0
    %415 = vmatpush1.msra.mxu0 0.0
    %416 = vmatprep.subr.mxu0 0.0
    %417 = vmatpush1.msra.mxu0 0.0
    %418 = vmatprep.subr.mxu0 0.0
    %419 = vmatpush1.msra.mxu0 0.0
    %420 = vmatprep.subr.mxu0 0.0
    %421 = vmatpush1.msra.mxu0 0.0
    %422 = vmatprep.subr.mxu0 0.0
    %423 = vmatpush1.msra.mxu0 0.0
    %424 = vmatprep.subr.mxu0 0.0
    %425 = vmatpush1.msra.mxu0 0.0
    %426 = vmatprep.subr.mxu0 0.0
    %427 = vmatpush1.msra.mxu0 0.0
    %428 = vmatprep.subr.mxu0 0.0
    %429 = vmatpush1.msra.mxu0 0.0
    %430 = vmatprep.subr.mxu0 0.0
    %431 = vmatpush1.msra.mxu0 0.0
    %432 = vmatprep.subr.mxu0 0.0
    %433 = vmatpush1.msra.mxu0 0.0
    %434 = vmatprep.subr.mxu0 0.0
    %435 = vmatpush1.msra.mxu0 0.0
    %436 = vmatprep.subr.mxu0 0.0
    %437 = vmatpush1.msra.mxu0 0.0
    %438 = vmatprep.subr.mxu0 0.0
    %439 = vmatpush1.msra.mxu0 0.0
    %440 = vmatprep.subr.mxu0 0.0
    %441 = vmatpush1.msra.mxu0 0.0
    %442 = vmatprep.subr.mxu0 0.0
    %443 = vmatpush1.msra.mxu0 0.0
    %444 = vmatprep.subr.mxu0 0.0
    %445 = vmatpush1.msra.mxu0 0.0
    %446 = vmatprep.subr.mxu0 0.0
    %447 = vmatpush1.msra.mxu0 0.0
    %448 = vmatprep.subr.mxu0 0.0
    %449 = vmatpush1.msra.mxu0 0.0
    %450 = vmatprep.subr.mxu0 0.0
    %451 = vmatpush1.msra.mxu0 0.0
    %452 = vmatprep.subr.mxu0 0.0
    %453 = vmatpush1.msra.mxu0 0.0
    %454 = vmatprep.subr.mxu0 0.0
    %455 = vmatpush1.msra.mxu0 0.0
    %456 = vmatprep.mubr.f32.mxu0 0.0
    %457 = vmatmul.mubr.f32.gmra.mrb[0].mxu0 %v292
    %v458 = vpop.f32.mrb[0].mxu0
    %v459 = vadd.f32 %v273, %v458
    %v460 = vpop.f32.mrb[0].mxu0
    %v461 = vadd.f32 %v273, %v460
    %462 = vmatprep.mubr.f32.mxu0 0.0
    %463 = vmatmul.mubr.f32.gmra.mrb[0].mxu0 %v295
    %v464 = vpop.f32.mrb[0].mxu0
    %v465 = vadd.f32 %v278, %v464
    %v466 = vpop.f32.mrb[0].mxu0
    %v467 = vadd.f32 %v278, %v466
    %468 = vmatprep.mubr.f32.mxu0 0.0
    %469 = vmatmul.mubr.f32.gmra.mrb[0].mxu0 %v298
    %v470 = vpop.f32.mrb[0].mxu0
    %v471 = vadd.f32 %v283, %v470
    %v472 = vpop.f32.mrb[0].mxu0
    %v473 = vadd.f32 %v283, %v472
    %474 = vmatprep.mubr.f32.mxu0 0.0
    %475 = vmatmul.mubr.f32.gmra.mrb[0].mxu0 %v301
    %v476 = vpop.f32.mrb[0].mxu0
    %v477 = vadd.f32 %v288, %v476
    %v478 = vpop.f32.mrb[0].mxu0
    %v479 = vadd.f32 %v288, %v478
    %480 = vdwg.mxu0
    %v481 = vmax.f32 %v370, 0.0
    %v482 = vmax.f32 %v372, 0.0
    %v483 = vmax.f32 %v459, 0.0
    %v484 = vmax.f32 %v461, 0.0
    %v485 = vmax.f32 %v376, 0.0
    %v486 = vmax.f32 %v378, 0.0
    %v487 = vmax.f32 %v465, 0.0
    %v488 = vmax.f32 %v467, 0.0
    %v489 = vmax.f32 %v382, 0.0
    %v490 = vmax.f32 %v384, 0.0
    %v491 = vmax.f32 %v471, 0.0
    %v492 = vmax.f32 %v473, 0.0
    %v493 = vmax.f32 %v388, 0.0
    %v494 = vmax.f32 %v390, 0.0
    %v495 = vmax.f32 %v477, 0.0
    %v496 = vmax.f32 %v479, 0.0
    %498 = vset.pattern.permute.xlu0 0
    %499 = vperm.xlu0 %498, %v26
    %v500 = vpop.permute.xlu0 %499
    %503 = vset.pattern.permute.xlu0 0
    %504 = vperm.xlu0 %503, %v27
    %v505 = vpop.permute.xlu0 %504
    %508 = vset.pattern.permute.xlu0 0
    %509 = vperm.xlu0 %508, %v28
    %v510 = vpop.permute.xlu0 %509
    %513 = vset.pattern.permute.xlu0 0
    %514 = vperm.xlu0 %513, %v29
    %v515 = vpop.permute.xlu0 %514
    %v517 = vmul.f32 %v481, %v500
    %v518 = vmul.f32 %v482, %v500
    %v519 = vmul.f32 %v483, %v500
    %v520 = vmul.f32 %v484, %v500
    %v521 = vmul.f32 %v485, %v505
    %v522 = vmul.f32 %v486, %v505
    %v523 = vmul.f32 %v487, %v505
    %v524 = vmul.f32 %v488, %v505
    %v525 = vmul.f32 %v489, %v510
    %v526 = vmul.f32 %v490, %v510
    %v527 = vmul.f32 %v491, %v510
    %v528 = vmul.f32 %v492, %v510
    %v529 = vmul.f32 %v493, %v515
    %v530 = vmul.f32 %v494, %v515
    %v531 = vmul.f32 %v495, %v515
    %v532 = vmul.f32 %v496, %v515
    %v533 = vadd.f32 %v517, %v521
    %v534 = vadd.f32 %v533, %v525
    %v535 = vadd.f32 %v534, %v529
    %v536 = vrot.slane %v535, 4
    %v537 = vadd.f32 %v535, %v536
    %v538 = vrot.slane %v537, 2
    %v539 = vadd.f32 %v537, %v538
    %v540 = vrot.slane %v539, 1
    %v541 = vadd.f32 %v539, %v540
    %v542 = vadd.f32 %v518, %v522
    %v543 = vadd.f32 %v542, %v526
    %v544 = vadd.f32 %v543, %v530
    %v545 = vrot.slane %v544, 4
    %v546 = vadd.f32 %v544, %v545
    %v547 = vrot.slane %v546, 2
    %v548 = vadd.f32 %v546, %v547
    %v549 = vrot.slane %v548, 1
    %v550 = vadd.f32 %v548, %v549
    %v551 = vadd.f32 %v519, %v523
    %v552 = vadd.f32 %v551, %v527
    %v553 = vadd.f32 %v552, %v531
    %v554 = vrot.slane %v553, 4
    %v555 = vadd.f32 %v553, %v554
    %v556 = vrot.slane %v555, 2
    %v557 = vadd.f32 %v555, %v556
    %v558 = vrot.slane %v557, 1
    %v559 = vadd.f32 %v557, %v558
    %v560 = vadd.f32 %v520, %v524
    %v561 = vadd.f32 %v560, %v528
    %v562 = vadd.f32 %v561, %v532
    %v563 = vrot.slane %v562, 4
    %v564 = vadd.f32 %v562, %v563
    %v565 = vrot.slane %v564, 2
    %v566 = vadd.f32 %v564, %v565
    %v567 = vrot.slane %v566, 1
    %v568 = vadd.f32 %v566, %v567
    %570 = vset.pattern.permute.xlu0 0
    %571 = vperm.xlu0 %570, %v30
    %v572 = vpop.permute.xlu0 %571
    %v574 = vadd.f32 %v541, %v572
    %v575 = vadd.f32 %v550, %v572
    %v576 = vadd.f32 %v559, %v572
    %v577 = vadd.f32 %v568, %v572
    %v582 = vcombine.low %v574, %v575
    %v583 = vcombine.low %v576, %v577
    %v585 = vunpack.c.l.s4 1966171168
    %v586 = vunpack.c.0.s8 %v585
    %v587 = vlaneseq
    %v588 = vshrl.u32 %v587, 7
    %v589 = vsub.s32 %v586, %v588
    %v590 = vrot.slane %v582, %v589
    %v592 = vunpack.c.l.s4 1966171168
    %v593 = vunpack.c.0.s8 %v592
    %v594 = vlaneseq
    %v595 = vshrl.u32 %v594, 7
    %v596 = vsub.s32 %v593, %v595
    %v597 = vrot.slane %v583, %v596
    %v598 = vcombine.low %v590, %v597
    %v600 = vunpack.c.l.s4 1966171168
    %v601 = vunpack.c.0.s8 %v600
    %v602 = vlaneseq
    %v603 = vshrl.u32 %v602, 7
    %v604 = vsub.s32 %v601, %v603
    %v605 = vrot.slane %v598, %v604
    %v607 = vlaneseq
    %vm608 = vcmp.ge.s32.totalorder %v607, 0
    %vm609 = vcmp.lt.s32.totalorder %v607, 512
    %vm610 = vmand %vm608, %vm609
    %611 = vst.msk [vmem:[#allocation2] sm:$0xf] %vm610, %v605
    // Predicated region
    $region18: #{tpu_custom_call.1} parent=1 // pred_check
      _
    $region19: #{tpu_custom_call.1} parent=1 // pred_check_branch
      %613 = sbr.rel (0) target = $region21
    $region20: #{tpu_custom_call.1} parent=1 // pred_region
      %s615 = ssub.s32 64, 64
      %616 = vsyncadd [#allocation3], %s615
      %s618 = sshll.u32 [#allocation2], 4
      %s619 = int_to_ptr.vmem [resolvable:$true] %s618
      %621 = dma.vmem_to_hbm [thread:$0]  %s619, 64, %s4, [#allocation3]
    $region21: #{tpu_custom_call.1} parent=1 // pred_fallthru
      _
    // Predicated region
    $region22: #{tpu_custom_call.1} parent=1 // pred_check
      _
    $region23: #{tpu_custom_call.1} parent=1 // pred_check_branch
      %623 = sbr.rel (0) target = $region25
    $region24: #{tpu_custom_call.1} parent=1 // pred_region
      %624 = dma.done [#allocation3], 64
    $region25: #{tpu_custom_call.1} parent=1 // pred_fallthru
      _
    %625 = vsyncpa [#allocation3], 1

</llo_original>
